<compile_context>
chip_gen: v7x
topology: tpu7x:2x2x1
jax: 0.10.0
libtpu: 0.0.40
codegen_flags: <defaults>
</compile_context>

<pallas_src>
import numpy as np
import jax
import jax.numpy as jnp
from jax.experimental import pallas as pl
from jax.experimental.pallas import tpu as pltpu


# ------------------------------ Pallas kernel (hot path) ------------------------------
def _make_to_rgb_kernel(has_skip, conv_clamp):
    def kernel(x_ref, w_ref, b_ref, *rest):
        # x_ref : (Cin, TL)   activation tile, native dtype (spatial on lanes)
        # w_ref : (Cout, Cin) bf16 modulated 1x1 weights for this batch element
        # b_ref : (Cout, 1)   f32 bias
        # skip  : (Cout, TL)  optional skip tile, native dtype
        # o_ref : (Cout, TL)  output tile
        if has_skip:
            skip_ref, o_ref = rest
        else:
            (o_ref,) = rest
        # Cast inside the kernel: VPU casts are free in this DMA-bound regime.
        acc = jnp.dot(w_ref[...], x_ref[...].astype(jnp.bfloat16),
                      preferred_element_type=jnp.float32)
        acc = acc + b_ref[...]                          # (Cout,1) broadcast over lanes
        if conv_clamp is not None:                      # bias_act clamp (before skip add)
            c = float(conv_clamp)
            acc = jnp.clip(acc, -c, c)
        if has_skip:
            acc = acc + skip_ref[...].astype(jnp.float32)
        o_ref[...] = acc.astype(o_ref.dtype)
    return kernel


# ------------------------------ tile / VMEM selection ---------------------------------
_MAX_SPATIAL_TILE = 32768                       # lanes
_WORKING_SET_BUDGET = 16 * 1024 * 1024          # double-buffered bytes/step; safe on v5e/v6e/v7x


def _select_spatial_tile(hw, per_lane_bytes):
    """Largest multiple-of-128 lane tile whose double-buffered working set fits the budget."""
    hw_padded = pl.cdiv(hw, 128) * 128
    tl = (_WORKING_SET_BUDGET // (2 * per_lane_bytes)) // 128 * 128
    tl = max(128, min(tl, _MAX_SPATIAL_TILE, hw_padded))
    return int(tl)


# ------------------------------------ JAX wrapper --------------------------------------
def to_rgb_forward(x, style, conv_weight, affine_weight, affine_bias, bias,
                   conv_clamp=None, skip=None, out_dtype=None, impl="auto"):
    """Pallas implementation of ToRGB.forward (kernel_size=1, demodulate=False, up=1).

    impl      : 'auto' (route tiny shapes to XLA), 'pallas', or 'xla'.
    out_dtype : output dtype; defaults to x.dtype (pass bf16 if downstream tolerates it).
    """
    assert impl in ("auto", "pallas", "xla")
    B, Cin, H, W = x.shape
    Cout = conv_weight.shape[0]
    style_dim = affine_weight.shape[1]
    HW = H * W
    out_dtype = jnp.dtype(out_dtype) if out_dtype is not None else x.dtype

    # --- tiny per-batch modulation (wrapper glue, f32, O(B*Cout*Cin)) -------------------
    s = (style.astype(jnp.float32)
         @ (affine_weight.astype(jnp.float32).T * (1.0 / np.sqrt(style_dim)))
         + affine_bias.astype(jnp.float32))                                   # (B, Cin)
    w_gain = 1.0 / np.sqrt(Cin)                                               # kernel_size == 1
    w_mod = conv_weight.astype(jnp.float32)[None] * w_gain * s[:, None, :]    # (B, Cout, Cin)
    bias_f32 = bias.astype(jnp.float32)

    has_skip = skip is not None
    if has_skip and skip.shape != (B, Cout, H, W):
        # TODO(synk): mismatched-shape skip needs upsample2d (up=2, [1,3,3,1] FIR); not implemented.
        raise NotImplementedError("only same-shape skip is supported")

    # --- dispatch: tiny spatial extents / tiny traffic are better served by plain XLA ---
    x_bytes = x.dtype.itemsize
    out_bytes = jnp.dtype(out_dtype).itemsize
    skip_bytes = skip.dtype.itemsize if has_skip else 0
    per_lane_bytes = Cin * x_bytes + Cout * out_bytes + Cout * skip_bytes
    total_bytes = B * HW * per_lane_bytes
    use_pallas = (impl != "xla") and HW >= 128 and (
        impl == "pallas" or total_bytes >= (1 << 20))

    if not use_pallas:
        y = jnp.einsum("boc,bcs->bos", w_mod, x.reshape(B, Cin, HW).astype(jnp.float32),
                       precision=jax.lax.Precision.HIGHEST)
        y = y + bias_f32[None, :, None]
        if conv_clamp is not None:
            y = jnp.clip(y, -float(conv_clamp), float(conv_clamp))
        if has_skip:
            y = y + skip.reshape(B, Cout, HW).astype(jnp.float32)
        return y.reshape(B, Cout, H, W).astype(out_dtype)

    # --- lane-dense operands; NO dtype conversion passes on the big arrays --------------
    x_flat = x.reshape(B, Cin, HW)                     # native dtype, free reshape
    w_bf16 = w_mod.astype(jnp.bfloat16)                # tiny (B*Cout*Cin)
    bias2d = bias_f32.reshape(Cout, 1)

    TL = _select_spatial_tile(HW, per_lane_bytes)
    n_sp = pl.cdiv(HW, TL)

    # Put the axis that actually has >1 block first so a v7x megacore split has work on
    # both TensorCores even when B == 1 (both axes stay "parallel").
    spatial_major = (B == 1 and n_sp > 1)
    if spatial_major:
        grid = (n_sp, B)
        bx_map = lambda j, b: (b, 0, j)      # x / skip / out blocks
        w_map = lambda j, b: (b, 0, 0)
        bias_map = lambda j, b: (0, 0)
    else:
        grid = (B, n_sp)
        bx_map = lambda b, j: (b, 0, j)
        w_map = lambda b, j: (b, 0, 0)
        bias_map = lambda b, j: (0, 0)

    in_specs = [
        pl.BlockSpec((pl.Squeezed(), Cin, TL), bx_map),
        pl.BlockSpec((pl.Squeezed(), Cout, Cin), w_map),
        pl.BlockSpec((Cout, 1), bias_map),
    ]
    args = [x_flat, w_bf16, bias2d]
    if has_skip:
        in_specs.append(pl.BlockSpec((pl.Squeezed(), Cout, TL), bx_map))
        args.append(skip.reshape(B, Cout, HW))

    # Explicit VMEM limit derived from the double-buffered working set (+ headroom);
    # stays well inside v7x's 64 MiB physical VMEM and raises v5e's 16 MiB default.
    vmem_need = 2 * per_lane_bytes * TL + 2 * (Cout * Cin * 2 + Cout * 4)
    vmem_limit = int(min(32 << 20, max(16 << 20, vmem_need * 1.25 + (2 << 20))))

    cost = pl.CostEstimate(
        flops=2 * B * HW * Cin * Cout,
        transcendentals=0,
        bytes_accessed=int(total_bytes + B * Cout * Cin * 2 + Cout * 4),
    )

    out = pl.pallas_call(
        _make_to_rgb_kernel(has_skip, conv_clamp),
        out_shape=jax.ShapeDtypeStruct((B, Cout, HW), out_dtype),
        grid_spec=pltpu.PrefetchScalarGridSpec(
            num_scalar_prefetch=0,
            grid=grid,
            in_specs=in_specs,
            out_specs=pl.BlockSpec((pl.Squeezed(), Cout, TL), bx_map),
        ),
        compiler_params=pltpu.CompilerParams(
            dimension_semantics=("parallel", "parallel"),
            vmem_limit_bytes=vmem_limit),
        cost_estimate=cost,
    )(*args)

    return out.reshape(B, Cout, H, W)


# --------------------------------- pure-JAX reference -----------------------------------
def to_rgb_reference(x, style, conv_weight, affine_weight, affine_bias, bias,
                     conv_clamp=None, skip=None):
    B, Cin, H, W = x.shape
    style_dim = affine_weight.shape[1]
    hp = jax.lax.Precision.HIGHEST
    s = (jnp.matmul(style.astype(jnp.float32),
                    affine_weight.astype(jnp.float32).T * (1.0 / np.sqrt(style_dim)),
                    precision=hp)
         + affine_bias.astype(jnp.float32))                                   # (B, Cin)
    w_mod = conv_weight.astype(jnp.float32)[None] * (1.0 / np.sqrt(Cin)) * s[:, None, :]
    y = jnp.einsum("boc,bchw->bohw", w_mod, x.astype(jnp.float32), precision=hp)
    y = y + bias.astype(jnp.float32)[None, :, None, None]
    if conv_clamp is not None:
        y = jnp.clip(y, -float(conv_clamp), float(conv_clamp))
    if skip is not None:
        y = y + skip.astype(jnp.float32)
    return y


# --------------------------------------- main --------------------------------------------
if __name__ == "__main__":
    B, Cin, Cout, H, W, style_dim = 2, 16, 3, 32, 32, 32
    key = jax.random.PRNGKey(0)
    kx, ks, kw, ka, kb, ksk = jax.random.split(key, 6)

    x = jax.random.normal(kx, (B, Cin, H, W), dtype=jnp.float32)
    style = jax.random.normal(ks, (B, style_dim), dtype=jnp.float32)

    # Parameters per the module init:
    #   ModulatedConv2d.weight ~ randn([1, Cout, Cin, 1, 1]) -> (Cout, Cin) here (ks=1)
    #   affine = FullyConnectedLayer(style_dim, Cin, bias_init=1)
    #   ToRGB.bias = zeros([Cout]) (small random values here to exercise the path)
    conv_weight = jax.random.normal(kw, (Cout, Cin), dtype=jnp.float32)
    affine_weight = jax.random.normal(ka, (Cin, style_dim), dtype=jnp.float32)
    affine_bias = jnp.ones((Cin,), dtype=jnp.float32)
    bias = 0.1 * jax.random.normal(kb, (Cout,), dtype=jnp.float32)
    skip = jax.random.normal(ksk, (B, Cout, H, W), dtype=jnp.float32)

    # 1) Pallas path: no skip, no clamp.
    y = to_rgb_forward(x, style, conv_weight, affine_weight, affine_bias, bias,
                       impl="pallas")
    jax.block_until_ready(y)
    y_ref = to_rgb_reference(x, style, conv_weight, affine_weight, affine_bias, bias)
    assert y.shape == (B, Cout, H, W) and y.dtype == x.dtype
    np.testing.assert_allclose(np.asarray(y), np.asarray(y_ref), rtol=3e-2, atol=3e-2)

    # 2) Pallas path: fused clamp + same-shape skip in the kernel epilogue.
    y2 = to_rgb_forward(x, style, conv_weight, affine_weight, affine_bias, bias,
                        conv_clamp=2.0, skip=skip, impl="pallas")
    jax.block_until_ready(y2)
    y2_ref = to_rgb_reference(x, style, conv_weight, affine_weight, affine_bias, bias,
                              conv_clamp=2.0, skip=skip)
    np.testing.assert_allclose(np.asarray(y2), np.asarray(y2_ref), rtol=3e-2, atol=3e-2)

    # 3) Tiny resolution (HW < 128): auto-dispatch routes to the plain XLA einsum path.
    x_s, skip_s = x[:, :, :8, :8], skip[:, :, :8, :8]
    y3 = to_rgb_forward(x_s, style, conv_weight, affine_weight, affine_bias, bias,
                        skip=skip_s)
    jax.block_until_ready(y3)
    y3_ref = to_rgb_reference(x_s, style, conv_weight, affine_weight, affine_bias, bias,
                              skip=skip_s)
    np.testing.assert_allclose(np.asarray(y3), np.asarray(y3_ref), rtol=3e-2, atol=3e-2)

    print("KERNEL_OK")
</pallas_src>

<mosaic_0001>
module attributes {stable_mosaic.version = 11 : i64} {
  func.func @kernel(%arg0: i32, %arg1: i32, %arg2: memref<1x16x1024xf32, #tpu.memory_space<vmem>>, %arg3: memref<1x3x16xbf16, #tpu.memory_space<vmem>>, %arg4: memref<3x1xf32, #tpu.memory_space<vmem>>, %arg5: memref<1x3x1024xf32, #tpu.memory_space<vmem>>) attributes {dimension_semantics = [#tpu.dimension_semantics<parallel>, #tpu.dimension_semantics<parallel>], iteration_bounds = array<i64: 2, 1>, scalar_prefetch = 0 : i64, scratch_operands = 0 : i64, tpu.core_type = #tpu.core_type<tc>, window_params = [{transform_indices = @transform_0, window_bounds = array<i64: 1, 16, 1024>}, {transform_indices = @transform_1, window_bounds = array<i64: 1, 3, 16>}, {pipeline_mode = #tpu.pipeline_mode<synchronous>, transform_indices = @transform_2, window_bounds = array<i64: 3, 1>}, {transform_indices = @transform_3, window_bounds = array<i64: 1, 3, 1024>}]} {
    %c0 = arith.constant 0 : index
    %c0_0 = arith.constant 0 : index
    %c0_1 = arith.constant 0 : index
    %0 = vector.load %arg3[%c0, %c0_0, %c0_1] : memref<1x3x16xbf16, #tpu.memory_space<vmem>>, vector<1x3x16xbf16>
    %1 = vector.shape_cast %0 : vector<1x3x16xbf16> to vector<3x16xbf16>
    %c0_2 = arith.constant 0 : index
    %c0_3 = arith.constant 0 : index
    %c0_4 = arith.constant 0 : index
    %2 = vector.load %arg2[%c0_2, %c0_3, %c0_4] : memref<1x16x1024xf32, #tpu.memory_space<vmem>>, vector<1x16x1024xf32>
    %3 = vector.shape_cast %2 : vector<1x16x1024xf32> to vector<16x1024xf32>
    %4 = arith.truncf %3 : vector<16x1024xf32> to vector<16x1024xbf16>
    %cst = arith.constant dense<0.000000e+00> : vector<3x1024xf32>
    %5 = tpu.matmul %1, %4, %cst {dimension_numbers = #tpu.dot_dimension_numbers<[1], [0], [0], [1], [0, 0, 1, 1], [], []>} : vector<3x16xbf16>, vector<16x1024xbf16>, vector<3x1024xf32> -> vector<3x1024xf32>
    %c0_5 = arith.constant 0 : index
    %c0_6 = arith.constant 0 : index
    %6 = vector.load %arg4[%c0_5, %c0_6] : memref<3x1xf32, #tpu.memory_space<vmem>>, vector<3x1xf32>
    %7 = vector.broadcast %6 : vector<3x1xf32> to vector<3x1024xf32>
    %8 = arith.addf %5, %7 : vector<3x1024xf32>
    %c0_7 = arith.constant 0 : index
    %c0_8 = arith.constant 0 : index
    %c0_9 = arith.constant 0 : index
    %9 = vector.load %arg5[%c0_7, %c0_8, %c0_9] : memref<1x3x1024xf32, #tpu.memory_space<vmem>>, vector<1x3x1024xf32>
    %10 = vector.shape_cast %9 : vector<1x3x1024xf32> to vector<3x1024xf32>
    %11 = vector.shape_cast %8 : vector<3x1024xf32> to vector<1x3x1024xf32>
    tpu.vector_store %arg5[%c0_7, %c0_8, %c0_9], %11 {strides = array<i32>} : memref<1x3x1024xf32, #tpu.memory_space<vmem>>, vector<1x3x1024xf32>,
    return
  }
  func.func @transform_0(%arg0: i32, %arg1: i32) -> (i32, i32, i32) {
    %c0_i32 = arith.constant 0 : i32
    %c0_i32_0 = arith.constant 0 : i32
    return %arg0, %c0_i32, %arg1 : i32, i32, i32
  }
  func.func @transform_1(%arg0: i32, %arg1: i32) -> (i32, i32, i32) {
    %c0_i32 = arith.constant 0 : i32
    %c0_i32_0 = arith.constant 0 : i32
    %c0_i32_1 = arith.constant 0 : i32
    return %arg0, %c0_i32, %c0_i32_0 : i32, i32, i32
  }
  func.func @transform_2(%arg0: i32, %arg1: i32) -> (i32, i32) {
    %c0_i32 = arith.constant 0 : i32
    %c0_i32_0 = arith.constant 0 : i32
    %c0_i32_1 = arith.constant 0 : i32
    return %c0_i32, %c0_i32_0 : i32, i32
  }
  func.func @transform_3(%arg0: i32, %arg1: i32) -> (i32, i32, i32) {
    %c0_i32 = arith.constant 0 : i32
    %c0_i32_0 = arith.constant 0 : i32
    return %arg0, %c0_i32, %arg1 : i32, i32, i32
  }
}

</mosaic_0001>

<llo_original>
// kernel: tpu_custom_call.1
$region0: #{tpu_custom_call.1}
  #allocation0 [shape = 'u32[]', space=smem, size = 0x4, offset = 0x4, fixed_abs, tag = 'smem constant byte address 0x4 - core index']
  #allocation1 [shape = 'u32[144,128]{1,0:T(1,128)}', space=vmem, size = 0x12000, scoped, tag = 'internal scratch']
  %s0 = inlined_call_operand.hbm [shape: f32[2,16,1024], index: 0, kind: input, shape index: {}]
  %s1 = inlined_call_operand.vmem [shape: bf16[2,3,16], index: 1, kind: input, shape index: {}]
  %s2 = inlined_call_operand.vmem [shape: f32[3,1], index: 2, kind: input, shape index: {}]
  %s3 = inlined_call_operand.vmem [shape: f32[2,3,1024], index: 3, kind: output, shape index: {}]
  %s4 = sld [smem:[#allocation0]]
  $region49: #{tpu_custom_call.1} parent=0
    _
  %s6 = ssub.s32 1, %s4
  %s7 = scalar_select 0, %s6, %s4
  $region1: #{tpu_custom_call.1} parent=0
    #allocation2 [shape = 'u8[131072]{0}', space=vmem, size = 0x20000, scoped, tag = 'input window, operand 0']
    #allocation3 [shape = 's32[2]{0}', space=sflag, size = 0x8, scoped, tag = 'scoped memory for tpu_custom_call.1']
    %8 = vsyncpa [#allocation3], 0
    %s9 = scalar_lea.sflag [#allocation3], 1
    %10 = vsyncpa %s9, 0
    loop: start=0, step=1, limit=4
    $region2: #{tpu_custom_call.1} parent=1 // loop_pre_header
      _
    $region3: #{tpu_custom_call.1} parent=1 // loop_header
      %s12 = sphi 0, %s16
      %p13 = scmp.ge.s32.totalorder %s12, 4
      %s19 = sphi 0, %s31
      %s20 = sphi 0, %s27
      %s21 = sphi 0, %s19
      %s22 = sphi 0, %s20
      %s23 = sphi 0, %s21
      %s24 = sphi 0, %s22
      %s36 = sphi 0, %s38
      %s39 = sphi 0, %s36
      %s40 = sphi 0, %s39
      %s56 = sphi 0, %s40
      %s62 = sphi 0, %s64
      %s65 = sphi 0, %s62
      %s66 = sphi 0, %s65
      %s82 = sphi 0, %s66
      %s86 = sphi 0, %s86
      %s88 = sphi 0, %s86
      %s89 = sphi 0, %s88
      %s103 = sphi 0, %s89
      %s111 = sphi 0, %s113
      %s114 = sphi 0, %s111
      %s115 = sphi 0, %s114
      %s131 = sphi 0, %s115
    $region4: #{tpu_custom_call.1} parent=1 // loop_header_branch
      %15 = sbr.rel (%p13) target = $region8
    $region5: #{tpu_custom_call.1} parent=1 // loop_body
      %s17 = ssub.s32 %s12, 1
      %s18 = ssub.s32 %s12, 2
      %s25 = sadd.s32 1, %s20
      %p26 = scmp.ge.s32.totalorder %s25, 1
      %s27 = scalar_select %p26, 0, %s25
      %s28 = sadd.s32 1, %s19
      %s29 = scalar_select %p26, %s28, %s19
      %p30 = scmp.ge.s32.totalorder %s29, 2
      %s31 = scalar_select %p30, 0, %s29
      %s32 = ssub.s32 %s19, %s31
      %s33 = ssub.s32 %s20, %s27
      %s34 = sor.u32 %s32, %s33
      %p35 = scmp.eq.s32.totalorder %s34, 0
      %s37 = sadd.s32 %s36, 1
      %s38 = scalar_select %p35, %s36, %s37
      %p41 = pneg %p35
      %p42 = scmp.eq.s32.totalorder %s12, 1
      %p43 = por %p41, %p42
      %p44 = scmp.ne.s32.totalorder %s36, %s39
      %p45 = scmp.eq.s32.totalorder %s12, 0
      %p46 = por %p44, %p45
      %p47 = scmp.ne.s32.totalorder %s36, %s39
      %p48 = scmp.eq.s32.totalorder %s17, 1
      %p49 = por %p47, %p48
      %p50 = scmp.ne.s32.totalorder %s39, %s40
      %p51 = scmp.eq.s32.totalorder %s17, 0
      %p52 = por %p50, %p51
      %p53 = scmp.ne.s32.totalorder %s39, %s40
      %p54 = scmp.eq.s32.totalorder %s18, 1
      %p55 = por %p53, %p54
      %p57 = scmp.ne.s32.totalorder %s40, %s56
      %p58 = scmp.eq.s32.totalorder %s18, 0
      %p59 = por %p57, %p58
      %s60 = ssub.s32 %s19, %s31
      %p61 = scmp.eq.s32.totalorder %s60, 0
      %s63 = sadd.s32 %s62, 1
      %s64 = scalar_select %p61, %s62, %s63
      %p67 = pneg %p61
      %p68 = scmp.eq.s32.totalorder %s12, 1
      %p69 = por %p67, %p68
      %p70 = scmp.ne.s32.totalorder %s62, %s65
      %p71 = scmp.eq.s32.totalorder %s12, 0
      %p72 = por %p70, %p71
      %p73 = scmp.ne.s32.totalorder %s62, %s65
      %p74 = scmp.eq.s32.totalorder %s17, 1
      %p75 = por %p73, %p74
      %p76 = scmp.ne.s32.totalorder %s65, %s66
      %p77 = scmp.eq.s32.totalorder %s17, 0
      %p78 = por %p76, %p77
      %p79 = scmp.ne.s32.totalorder %s65, %s66
      %p80 = scmp.eq.s32.totalorder %s18, 1
      %p81 = por %p79, %p80
      %p83 = scmp.ne.s32.totalorder %s66, %s82
      %p84 = scmp.eq.s32.totalorder %s18, 0
      %p85 = por %p83, %p84
      %s87 = sadd.s32 %s86, 1
      %p90 = scmp.eq.s32.totalorder %s12, 1
      %p91 = scmp.ne.s32.totalorder %s86, %s88
      %p92 = scmp.eq.s32.totalorder %s12, 0
      %p93 = por %p91, %p92
      %p94 = scmp.ne.s32.totalorder %s86, %s88
      %p95 = scmp.eq.s32.totalorder %s17, 1
      %p96 = por %p94, %p95
      %p97 = scmp.ne.s32.totalorder %s88, %s89
      %p98 = scmp.eq.s32.totalorder %s17, 0
      %p99 = por %p97, %p98
      %p100 = scmp.ne.s32.totalorder %s88, %s89
      %p101 = scmp.eq.s32.totalorder %s18, 1
      %p102 = por %p100, %p101
      %p104 = scmp.ne.s32.totalorder %s89, %s103
      %p105 = scmp.eq.s32.totalorder %s18, 0
      %p106 = por %p104, %p105
      %s107 = ssub.s32 %s19, %s31
      %s108 = ssub.s32 %s20, %s27
      %s109 = sor.u32 %s107, %s108
      %p110 = scmp.eq.s32.totalorder %s109, 0
      %s112 = sadd.s32 %s111, 1
      %s113 = scalar_select %p110, %s111, %s112
      %p116 = pneg %p110
      %p117 = scmp.eq.s32.totalorder %s12, 1
      %p118 = por %p116, %p117
      %p119 = scmp.ne.s32.totalorder %s111, %s114
      %p120 = scmp.eq.s32.totalorder %s12, 0
      %p121 = por %p119, %p120
      %p122 = scmp.ne.s32.totalorder %s111, %s114
      %p123 = scmp.eq.s32.totalorder %s17, 1
      %p124 = por %p122, %p123
      %p125 = scmp.ne.s32.totalorder %s114, %s115
      %p126 = scmp.eq.s32.totalorder %s17, 0
      %p127 = por %p125, %p126
      %p128 = scmp.ne.s32.totalorder %s114, %s115
      %p129 = scmp.eq.s32.totalorder %s18, 1
      %p130 = por %p128, %p129
      %p132 = scmp.ne.s32.totalorder %s115, %s131
      %p133 = scmp.eq.s32.totalorder %s18, 0
      %p134 = por %p132, %p133
      %p135 = scmp.le.s32.totalorder 1, %s12
      %p136 = scmp.lt.s32.totalorder %s12, 3
      %p137 = pnand %p135, %p136
      %p138 = pneg %p137
      // Predicated region
      $region9: #{tpu_custom_call.1} parent=5 // pred_check
        _
      $region10: #{tpu_custom_call.1} parent=5 // pred_check_branch
        %140 = sbr.rel (%p137) target = $region12
      $region11: #{tpu_custom_call.1} parent=5 // pred_region
        %s141 = ssub.s32 %s12, 1
        // Predicated region
        $region13: #{tpu_custom_call.1} parent=11 // pred_check
          %p142 = pneg %p99
        $region14: #{tpu_custom_call.1} parent=11 // pred_check_branch
          %144 = sbr.rel (%p142) target = $region16
        $region15: #{tpu_custom_call.1} parent=11 // pred_region
          _
        $region16: #{tpu_custom_call.1} parent=11 // pred_fallthru
          _
      $region12: #{tpu_custom_call.1} parent=5 // pred_fallthru
        _
      %p145 = scmp.lt.s32.totalorder %s12, 2
      // Predicated region
      $region17: #{tpu_custom_call.1} parent=5 // pred_check
        %p146 = pneg %p145
      $region18: #{tpu_custom_call.1} parent=5 // pred_check_branch
        %148 = sbr.rel (%p146) target = $region20
      $region19: #{tpu_custom_call.1} parent=5 // pred_region
        // Predicated region
        $region21: #{tpu_custom_call.1} parent=19 // pred_check
          %p149 = pneg %p46
        $region22: #{tpu_custom_call.1} parent=19 // pred_check_branch
          %151 = sbr.rel (%p149) target = $region24
        $region23: #{tpu_custom_call.1} parent=19 // pred_region
          %s152 = sand.u32 %s36, 1
          %s153 = scalar_lea.sflag [#allocation3], %s152
          %s154 = sand.u32 %s36, 1
          %s155 = smul.addr %s154, 128
          %s156 = scalar_lea.vmem [#allocation2], %s155
          %s157 = smul.u32 8, %s20
          %s159 = ssub.s32 2048, 2048
          %160 = vsyncadd %s153, %s159
          %s161 = smul.addr %s19, 16
          %s162 = sadd.s32 %s157, %s161
          %s163 = smul.addr %s162, 128
          %s164 = scalar_lea.hbm %s0, %s163
          %s165 = sshll.u32 %s156, 4
          %s166 = int_to_ptr.vmem [resolvable:$true] %s165
          %171 = dma.hbm_to_vmem [thread:$0]  %s164, 2048, %s166, %s153, 1024, 1024, 64
        $region24: #{tpu_custom_call.1} parent=19 // pred_fallthru
          _
        // Predicated region
        $region25: #{tpu_custom_call.1} parent=19 // pred_check
          %p172 = pneg %p72
        $region26: #{tpu_custom_call.1} parent=19 // pred_check_branch
          %174 = sbr.rel (%p172) target = $region28
        $region27: #{tpu_custom_call.1} parent=19 // pred_region
          %p175 = scmp.lt.s32.totalorder %s19, 1
          %s176 = scalar_select %p175, %s19, 1
          %s177 = smul.addr %s176, 2
          %s178 = scalar_lea.vmem %s1, %s177
        $region28: #{tpu_custom_call.1} parent=19 // pred_fallthru
          _
      $region20: #{tpu_custom_call.1} parent=5 // pred_fallthru
        _
      %p179 = scmp.le.s32.totalorder 1, %s12
      %p180 = scmp.lt.s32.totalorder %s12, 3
      %p181 = pnand %p179, %p180
      %p182 = pneg %p181
      // Predicated region
      $region29: #{tpu_custom_call.1} parent=5 // pred_check
        _
      $region30: #{tpu_custom_call.1} parent=5 // pred_check_branch
        %184 = sbr.rel (%p181) target = $region32
      $region31: #{tpu_custom_call.1} parent=5 // pred_region
        %s185 = ssub.s32 %s12, 1
        %s186 = sand.u32 %s39, 1
        %s187 = scalar_lea.sflag [#allocation3], %s186
        %s188 = sand.u32 %s39, 1
        %s189 = smul.addr %s188, 128
        %s190 = scalar_lea.vmem [#allocation2], %s189
        // Predicated region
        $region33: #{tpu_custom_call.1} parent=31 // pred_check
          %p191 = pneg %p52
        $region34: #{tpu_custom_call.1} parent=31 // pred_check_branch
          %193 = sbr.rel (%p191) target = $region36
        $region35: #{tpu_custom_call.1} parent=31 // pred_region
          %194 = dma.done %s187, 2048
        $region36: #{tpu_custom_call.1} parent=31 // pred_fallthru
          _
        %s195 = sand.u32 %s39, 1
        %s196 = scalar_lea.sflag [#allocation3], %s195
        %s197 = sand.u32 %s39, 1
        %s198 = smul.addr %s197, 128
        %s199 = scalar_lea.vmem [#allocation2], %s198
        %p200 = pneg %p52
        %p201 = pneg %p49
        %p202 = scmp.lt.s32.totalorder %s21, 1
        %s203 = scalar_select %p202, %s21, 1
        %s204 = smul.addr %s203, 2
        %s205 = scalar_lea.vmem %s1, %s204
        %p206 = pneg %p78
        %p207 = pneg %p75
        %p208 = pneg %p99
        %p209 = pneg %p96
        %p210 = pneg %p127
        %p211 = pneg %p124
        %s212 = smul.u32 8, %s22
        %p213 = scmp.lt.s32.totalorder %s21, 1
        %s214 = scalar_select %p213, %s21, 1
        %p215 = scmp.lt.s32.totalorder %s212, 7
        %s216 = scalar_select %p215, %s212, 7
        %s217 = smul.addr %s214, 8
        %s218 = sadd.s32 %s216, %s217
        %s219 = smul.addr %s218, 4
        %s220 = scalar_lea.vmem %s3, %s219
        %s221 = smul.u32 8, %s22
        %p222 = scmp.lt.s32.totalorder %s21, 1
        %s223 = scalar_select %p222, %s21, 1
        %s224 = smul.addr %s223, 2
        %s225 = scalar_lea.vmem %s1, %s224
        %s226 = smul.u32 8, %s22
        %p227 = scmp.lt.s32.totalorder %s21, 1
        %s228 = scalar_select %p227, %s21, 1
        %p229 = scmp.lt.s32.totalorder %s226, 7
        %s230 = scalar_select %p229, %s226, 7
        %s231 = smul.addr %s228, 8
        %s232 = sadd.s32 %s230, %s231
        %s233 = smul.addr %s232, 4
        %s234 = scalar_lea.vmem %s3, %s233
        %s235 = smul.u32 8, %s22
        %v237 = vld [vmem:[%s225] sm:$0x3]
        %v238 = vld [vmem:[%s190] sm:$0xff]
        %v239 = vld [vmem:[%s190 + $0x8] sm:$0xff]
        %v240 = vld [vmem:[%s190 + $0x10] sm:$0xff]
        %v241 = vld [vmem:[%s190 + $0x18] sm:$0xff]
        %v242 = vld [vmem:[%s190 + $0x20] sm:$0xff]
        %v243 = vld [vmem:[%s190 + $0x28] sm:$0xff]
        %v244 = vld [vmem:[%s190 + $0x30] sm:$0xff]
        %v245 = vld [vmem:[%s190 + $0x38] sm:$0xff]
        %v246 = vld [vmem:[%s190 + $0x40] sm:$0xff]
        %v247 = vld [vmem:[%s190 + $0x48] sm:$0xff]
        %v248 = vld [vmem:[%s190 + $0x50] sm:$0xff]
        %v249 = vld [vmem:[%s190 + $0x58] sm:$0xff]
        %v250 = vld [vmem:[%s190 + $0x60] sm:$0xff]
        %v251 = vld [vmem:[%s190 + $0x68] sm:$0xff]
        %v252 = vld [vmem:[%s190 + $0x70] sm:$0xff]
        %v253 = vld [vmem:[%s190 + $0x78] sm:$0xff]
        %v254 = vpack.c.bf16 %v246, %v238
        %v255 = vpack.c.bf16 %v247, %v239
        %v256 = vpack.c.bf16 %v248, %v240
        %v257 = vpack.c.bf16 %v249, %v241
        %v258 = vpack.c.bf16 %v250, %v242
        %v259 = vpack.c.bf16 %v251, %v243
        %v260 = vpack.c.bf16 %v252, %v244
        %v261 = vpack.c.bf16 %v253, %v245
        %v262 = vld [vmem:[%s2] sm:$0x7]
        %264 = vset.pattern.permute.xlu0 0
        %265 = vperm.xlu0 %264, %v262
        %v266 = vpop.permute.xlu0 %265
        %vm268 = vcmask 130048
        %v270 = vsel %vm268, %v237, 0
        %272 = vmatprep.subr.bf16.mxu0 %v255
        %273 = vmatpush1.bf16.msra.mxu0 %v254
        %274 = vmatprep.subr.bf16.mxu0 0
        %275 = vmatpush1.bf16.msra.mxu0 0
        %276 = vmatprep.subr.bf16.mxu0 0
        %277 = vmatpush1.bf16.msra.mxu0 0
        %278 = vmatprep.subr.bf16.mxu0 0
        %279 = vmatpush1.bf16.msra.mxu0 0
        %280 = vmatprep.subr.bf16.mxu0 0
        %281 = vmatpush1.bf16.msra.mxu0 0
        %282 = vmatprep.subr.bf16.mxu0 0
        %283 = vmatpush1.bf16.msra.mxu0 0
        %284 = vmatprep.subr.bf16.mxu0 0
        %285 = vmatpush1.bf16.msra.mxu0 0
        %286 = vmatprep.subr.bf16.mxu0 0
        %287 = vmatpush1.bf16.msra.mxu0 0
        %288 = vmatprep.subr.bf16.mxu0 0
        %289 = vmatpush1.bf16.msra.mxu0 0
        %290 = vmatprep.subr.bf16.mxu0 0
        %291 = vmatpush1.bf16.msra.mxu0 0
        %292 = vmatprep.subr.bf16.mxu0 0
        %293 = vmatpush1.bf16.msra.mxu0 0
        %294 = vmatprep.subr.bf16.mxu0 0
        %295 = vmatpush1.bf16.msra.mxu0 0
        %296 = vmatprep.subr.bf16.mxu0 0
        %297 = vmatpush1.bf16.msra.mxu0 0
        %298 = vmatprep.subr.bf16.mxu0 0
        %299 = vmatpush1.bf16.msra.mxu0 0
        %300 = vmatprep.subr.bf16.mxu0 0
        %301 = vmatpush1.bf16.msra.mxu0 0
        %302 = vmatprep.subr.bf16.mxu0 0
        %303 = vmatpush1.bf16.msra.mxu0 0
        %304 = vmatprep.mubr.bf16.mxu0 0
        %305 = vmatmul.mubr.bf16.gmra.mrb[0].mxu0 %v270
        %v306 = vpop.f32.mrb[0].mxu0
        %v307 = vadd.f32 %v266, %v306
        %v308 = vpop.f32.mrb[0].mxu0
        %v309 = vadd.f32 %v266, %v308
        %v310 = vpop.f32.mrb[0].mxu0
        %v311 = vpop.f32.mrb[0].mxu0
        %312 = vdwg.mxu0
        %313 = vmatprep.subr.bf16.mxu0 %v257
        %314 = vmatpush1.bf16.msra.mxu0 %v256
        %315 = vmatprep.subr.bf16.mxu0 0
        %316 = vmatpush1.bf16.msra.mxu0 0
        %317 = vmatprep.subr.bf16.mxu0 0
        %318 = vmatpush1.bf16.msra.mxu0 0
        %319 = vmatprep.subr.bf16.mxu0 0
        %320 = vmatpush1.bf16.msra.mxu0 0
        %321 = vmatprep.subr.bf16.mxu0 0
        %322 = vmatpush1.bf16.msra.mxu0 0
        %323 = vmatprep.subr.bf16.mxu0 0
        %324 = vmatpush1.bf16.msra.mxu0 0
        %325 = vmatprep.subr.bf16.mxu0 0
        %326 = vmatpush1.bf16.msra.mxu0 0
        %327 = vmatprep.subr.bf16.mxu0 0
        %328 = vmatpush1.bf16.msra.mxu0 0
        %329 = vmatprep.subr.bf16.mxu0 0
        %330 = vmatpush1.bf16.msra.mxu0 0
        %331 = vmatprep.subr.bf16.mxu0 0
        %332 = vmatpush1.bf16.msra.mxu0 0
        %333 = vmatprep.subr.bf16.mxu0 0
        %334 = vmatpush1.bf16.msra.mxu0 0
        %335 = vmatprep.subr.bf16.mxu0 0
        %336 = vmatpush1.bf16.msra.mxu0 0
        %337 = vmatprep.subr.bf16.mxu0 0
        %338 = vmatpush1.bf16.msra.mxu0 0
        %339 = vmatprep.subr.bf16.mxu0 0
        %340 = vmatpush1.bf16.msra.mxu0 0
        %341 = vmatprep.subr.bf16.mxu0 0
        %342 = vmatpush1.bf16.msra.mxu0 0
        %343 = vmatprep.subr.bf16.mxu0 0
        %344 = vmatpush1.bf16.msra.mxu0 0
        %345 = vmatprep.mubr.bf16.mxu0 0
        %346 = vmatmul.mubr.bf16.gmra.mrb[0].mxu0 %v270
        %v347 = vpop.f32.mrb[0].mxu0
        %v348 = vadd.f32 %v266, %v347
        %v349 = vpop.f32.mrb[0].mxu0
        %v350 = vadd.f32 %v266, %v349
        %v351 = vpop.f32.mrb[0].mxu0
        %v352 = vpop.f32.mrb[0].mxu0
        %353 = vdwg.mxu0
        %354 = vmatprep.subr.bf16.mxu0 %v259
        %355 = vmatpush1.bf16.msra.mxu0 %v258
        %356 = vmatprep.subr.bf16.mxu0 0
        %357 = vmatpush1.bf16.msra.mxu0 0
        %358 = vmatprep.subr.bf16.mxu0 0
        %359 = vmatpush1.bf16.msra.mxu0 0
        %360 = vmatprep.subr.bf16.mxu0 0
        %361 = vmatpush1.bf16.msra.mxu0 0
        %362 = vmatprep.subr.bf16.mxu0 0
        %363 = vmatpush1.bf16.msra.mxu0 0
        %364 = vmatprep.subr.bf16.mxu0 0
        %365 = vmatpush1.bf16.msra.mxu0 0
        %366 = vmatprep.subr.bf16.mxu0 0
        %367 = vmatpush1.bf16.msra.mxu0 0
        %368 = vmatprep.subr.bf16.mxu0 0
        %369 = vmatpush1.bf16.msra.mxu0 0
        %370 = vmatprep.subr.bf16.mxu0 0
        %371 = vmatpush1.bf16.msra.mxu0 0
        %372 = vmatprep.subr.bf16.mxu0 0
        %373 = vmatpush1.bf16.msra.mxu0 0
        %374 = vmatprep.subr.bf16.mxu0 0
        %375 = vmatpush1.bf16.msra.mxu0 0
        %376 = vmatprep.subr.bf16.mxu0 0
        %377 = vmatpush1.bf16.msra.mxu0 0
        %378 = vmatprep.subr.bf16.mxu0 0
        %379 = vmatpush1.bf16.msra.mxu0 0
        %380 = vmatprep.subr.bf16.mxu0 0
        %381 = vmatpush1.bf16.msra.mxu0 0
        %382 = vmatprep.subr.bf16.mxu0 0
        %383 = vmatpush1.bf16.msra.mxu0 0
        %384 = vmatprep.subr.bf16.mxu0 0
        %385 = vmatpush1.bf16.msra.mxu0 0
        %386 = vmatprep.mubr.bf16.mxu0 0
        %387 = vmatmul.mubr.bf16.gmra.mrb[0].mxu0 %v270
        %v388 = vpop.f32.mrb[0].mxu0
        %v389 = vadd.f32 %v266, %v388
        %v390 = vpop.f32.mrb[0].mxu0
        %v391 = vadd.f32 %v266, %v390
        %v392 = vpop.f32.mrb[0].mxu0
        %v393 = vpop.f32.mrb[0].mxu0
        %394 = vdwg.mxu0
        %395 = vmatprep.subr.bf16.mxu0 %v261
        %396 = vmatpush1.bf16.msra.mxu0 %v260
        %397 = vmatprep.subr.bf16.mxu0 0
        %398 = vmatpush1.bf16.msra.mxu0 0
        %399 = vmatprep.subr.bf16.mxu0 0
        %400 = vmatpush1.bf16.msra.mxu0 0
        %401 = vmatprep.subr.bf16.mxu0 0
        %402 = vmatpush1.bf16.msra.mxu0 0
        %403 = vmatprep.subr.bf16.mxu0 0
        %404 = vmatpush1.bf16.msra.mxu0 0
        %405 = vmatprep.subr.bf16.mxu0 0
        %406 = vmatpush1.bf16.msra.mxu0 0
        %407 = vmatprep.subr.bf16.mxu0 0
        %408 = vmatpush1.bf16.msra.mxu0 0
        %409 = vmatprep.subr.bf16.mxu0 0
        %410 = vmatpush1.bf16.msra.mxu0 0
        %411 = vmatprep.subr.bf16.mxu0 0
        %412 = vmatpush1.bf16.msra.mxu0 0
        %413 = vmatprep.subr.bf16.mxu0 0
        %414 = vmatpush1.bf16.msra.mxu0 0
        %415 = vmatprep.subr.bf16.mxu0 0
        %416 = vmatpush1.bf16.msra.mxu0 0
        %417 = vmatprep.subr.bf16.mxu0 0
        %418 = vmatpush1.bf16.msra.mxu0 0
        %419 = vmatprep.subr.bf16.mxu0 0
        %420 = vmatpush1.bf16.msra.mxu0 0
        %421 = vmatprep.subr.bf16.mxu0 0
        %422 = vmatpush1.bf16.msra.mxu0 0
        %423 = vmatprep.subr.bf16.mxu0 0
        %424 = vmatpush1.bf16.msra.mxu0 0
        %425 = vmatprep.subr.bf16.mxu0 0
        %426 = vmatpush1.bf16.msra.mxu0 0
        %427 = vmatprep.mubr.bf16.mxu0 0
        %428 = vmatmul.mubr.bf16.gmra.mrb[0].mxu0 %v270
        %v429 = vpop.f32.mrb[0].mxu0
        %v430 = vadd.f32 %v266, %v429
        %v431 = vpop.f32.mrb[0].mxu0
        %v432 = vadd.f32 %v266, %v431
        %v433 = vpop.f32.mrb[0].mxu0
        %v434 = vpop.f32.mrb[0].mxu0
        %435 = vdwg.mxu0
        %v444 = vcombine.low %v307, %v309
        %v445 = vcombine.low %v348, %v350
        %v446 = vcombine.low %v389, %v391
        %v447 = vcombine.low %v430, %v432
        %452 = vst [vmem:[%s234] sm:$0x77] %v444
        %453 = vst [vmem:[%s234 + $0x8] sm:$0x77] %v445
        %454 = vst [vmem:[%s234 + $0x10] sm:$0x77] %v446
        %455 = vst [vmem:[%s234 + $0x18] sm:$0x77] %v447
        %s456 = smul.u32 8, %s22
        %p457 = scmp.lt.s32.totalorder %s21, 1
        %s458 = scalar_select %p457, %s21, 1
        %p459 = scmp.lt.s32.totalorder %s456, 7
        %s460 = scalar_select %p459, %s456, 7
        %s461 = smul.addr %s458, 8
        %s462 = sadd.s32 %s460, %s461
        %s463 = smul.addr %s462, 4
        %s464 = scalar_lea.vmem %s3, %s463
        // Predicated region
        $region37: #{tpu_custom_call.1} parent=31 // pred_check
          %p465 = pneg %p124
        $region38: #{tpu_custom_call.1} parent=31 // pred_check_branch
          %467 = sbr.rel (%p465) target = $region40
        $region39: #{tpu_custom_call.1} parent=31 // pred_region
          %s468 = smul.u32 8, %s22
        $region40: #{tpu_custom_call.1} parent=31 // pred_fallthru
          _
      $region32: #{tpu_custom_call.1} parent=5 // pred_fallthru
        _
      %p469 = scmp.le.s32.totalorder 2, %s12
      // Predicated region
      $region41: #{tpu_custom_call.1} parent=5 // pred_check
        %p470 = pneg %p469
      $region42: #{tpu_custom_call.1} parent=5 // pred_check_branch
        %472 = sbr.rel (%p470) target = $region44
      $region43: #{tpu_custom_call.1} parent=5 // pred_region
        %s473 = ssub.s32 %s12, 2
        // Predicated region
        $region45: #{tpu_custom_call.1} parent=43 // pred_check
          %p474 = pneg %p130
        $region46: #{tpu_custom_call.1} parent=43 // pred_check_branch
          %476 = sbr.rel (%p474) target = $region48
        $region47: #{tpu_custom_call.1} parent=43 // pred_region
          %s477 = smul.u32 8, %s24
          %p478 = scmp.lt.s32.totalorder %s23, 1
          %s479 = scalar_select %p478, %s23, 1
          %p480 = scmp.lt.s32.totalorder %s477, 7
          %s481 = scalar_select %p480, %s477, 7
          %s482 = smul.addr %s479, 8
          %s483 = sadd.s32 %s481, %s482
          %s484 = smul.addr %s483, 4
          %s485 = scalar_lea.vmem %s3, %s484
        $region48: #{tpu_custom_call.1} parent=43 // pred_fallthru
          _
      $region44: #{tpu_custom_call.1} parent=5 // pred_fallthru
        _
    $region6: #{tpu_custom_call.1} parent=1 // loop_footer
      %s16 = sadd.s32 1, %s12
    $region7: #{tpu_custom_call.1} parent=1 // loop_footer_branch
      %11 = sbr.rel target = $region3
    $region8: #{tpu_custom_call.1} parent=1 // loop_exit
      _
    %486 = vsyncpa [#allocation3], 1
    %s487 = scalar_lea.sflag [#allocation3], 1
    %488 = vsyncpa %s487, 1

</llo_original>
